<compile_context>
chip_gen: v7x
topology: tpu7x:2x2x1
jax: 0.10.0
libtpu: 0.0.40
codegen_flags: <defaults>
</compile_context>

<pallas_src>
import functools
import math

import jax
import jax.numpy as jnp
from jax import lax
from jax.experimental import pallas as pl
from jax.experimental.pallas import tpu as pltpu


def _round_up(x, m):
    return ((x + m - 1) // m) * m


# --------------------------------------------------------------------------- #
# Kernel
# --------------------------------------------------------------------------- #
def _token_sparse_kernel(tok_ref, srow_ref, scol_ref,
                         sel_ref, extra_ref, mask_ref,
                         *, num_keep, k_pad, r_rows, a_chunk):
    Bt, L, C = tok_ref.shape

    s_row = srow_ref[...].astype(jnp.float32)            # (Bt, 1, L)  score on lanes

    # ---- stable descending rank via chunked pairwise comparison (VPU/XLU) ----
    # rank[b, j] = #{a : score[a] > score[j] or (score[a] == score[j] and a < j)}
    def rank_chunk(a0, s_col_chunk):
        # s_col_chunk: (Bt, Ac, 1) score on sublanes; broadcasts stay fused.
        a_idx = lax.broadcasted_iota(jnp.int32, (a_chunk, L), 0) + a0   # batch-invariant
        j_idx = lax.broadcasted_iota(jnp.int32, (a_chunk, L), 1)
        tri = a_idx < j_idx                                             # (Ac, L)
        m = (s_col_chunk > s_row) | ((s_col_chunk == s_row) & tri)      # (Bt, Ac, L)
        return jnp.sum(m.astype(jnp.int32), axis=1, keepdims=True)      # (Bt, 1, L)

    n_chunks = L // a_chunk
    if n_chunks == 1:
        rank = rank_chunk(0, scol_ref[...].astype(jnp.float32))
    else:
        def body(step, acc):
            a0 = pl.multiple_of(step * a_chunk, a_chunk)
            col = scol_ref[:, pl.ds(a0, a_chunk), :].astype(jnp.float32)
            return acc + rank_chunk(a0, col)
        rank = lax.fori_loop(0, n_chunks, body,
                             jnp.zeros((Bt, 1, L), jnp.int32))

    # ---- score_mask: 1.0 at kept token positions (torch scatter equivalent) ----
    keep = rank < num_keep                                              # (Bt, 1, L)
    mask_ref[...] = keep.astype(mask_ref.dtype)

    # ---- softmax over the dropped scores (weights for the extra token) ---------
    non_keep = jnp.logical_not(keep)
    neg_big = jnp.float32(jnp.finfo(jnp.float32).min)
    m = jnp.max(jnp.where(non_keep, s_row, neg_big), axis=2, keepdims=True)
    e = jnp.where(non_keep, jnp.exp(jnp.minimum(s_row - m, 0.0)), 0.0)
    z = jnp.sum(e, axis=2, keepdims=True)
    # guard z == 0 (sparse_ratio == 1.0 -> no dropped tokens -> extra_token = 0)
    w = e / jnp.maximum(z, jnp.float32(1e-30))                          # (Bt, 1, L)

    # ---- fused gather + weighted-sum matmul operand -----------------------------
    #   rows 0..K-1      : one-hot selecting the token with sorted rank r (gather)
    #   rows K..k_pad-1  : zero padding (keeps select_tokens sublane-dense)
    #   row  k_pad       : softmax weights of the dropped tokens (aligned slice)
    #   rows > k_pad     : zero padding
    r_idx = lax.broadcasted_iota(jnp.int32, (r_rows, L), 0)             # batch-invariant
    onehot = (rank == r_idx) & (r_idx < num_keep)                       # (Bt, r_rows, L)
    q = jnp.where(onehot, jnp.float32(1.0),
                  jnp.where(r_idx == k_pad, w, jnp.float32(0.0)))       # (Bt, r_rows, L)

    tok = tok_ref[...]
    mm = lambda a, b: jnp.einsum("brl,blc->brc", a, b,
                                 preferred_element_type=jnp.float32)
    if tok_ref.dtype == jnp.bfloat16:
        # one-hot gather stays exact in bf16; the weight row matches bf16 output tol.
        r = mm(q.astype(jnp.bfloat16), tok)
    else:
        # Manual 4-pass bf16 split: exact gather (3-way bf16 split of f32 is exact),
        # ~2^-18-accurate weight row, vs 6 MXU passes for HIGHEST.
        tok = tok.astype(jnp.float32)
        t0 = tok.astype(jnp.bfloat16)
        res1 = tok - t0.astype(jnp.float32)
        t1 = res1.astype(jnp.bfloat16)
        t2 = (res1 - t1.astype(jnp.float32)).astype(jnp.bfloat16)
        q_hi = q.astype(jnp.bfloat16)
        q_lo = (q - q_hi.astype(jnp.float32)).astype(jnp.bfloat16)
        r = (mm(q_hi, t0) + mm(q_hi, t1)) + (mm(q_hi, t2) + mm(q_lo, t0))

    sel_ref[...] = r[:, :k_pad, :].astype(sel_ref.dtype)
    extra_ref[...] = r[:, k_pad:k_pad + 1, :].astype(extra_ref.dtype)


# --------------------------------------------------------------------------- #
# Host-side policy helpers
# --------------------------------------------------------------------------- #
def _vmem_capacity_bytes():
    try:
        info = pltpu.get_tpu_info()
        cap = int(getattr(info, "vmem_capacity_bytes", 0))
        if cap > 0:
            return cap
    except Exception:
        pass
    return 128 * 1024 * 1024          # v5e / v6e default


def _pick_a_chunk(L, max_chunk=256):
    """Ranking chunk along the sublane ('a') axis: largest divisor of L that is
    <= max_chunk, preferring multiples of 8; falls back to L (no chunking)."""
    if L <= max_chunk:
        return L
    fallback = 1
    for d in range(max_chunk, 0, -1):
        if L % d == 0:
            if d % 8 == 0:
                return d
            fallback = max(fallback, d)
    return fallback if fallback >= 8 else L


def _per_batch_vmem_bytes(L, C, k_pad, r_rows, a_chunk, io_itemsize):
    Lp8, Lp128, Cp = _round_up(L, 8), _round_up(L, 128), _round_up(C, 128)
    # double-buffered pipelined IO per batch element (VMEM-resident block bytes)
    io = 2 * (Lp8 * Cp * io_itemsize          # tokens
              + 8 * Lp128 * 4                 # score, lane orientation (B,1,L)
              + Lp8 * 128 * 4                 # score, sublane orientation (128x lane pad)
              + k_pad * Cp * io_itemsize      # select_tokens (padded rows)
              + 8 * Cp * io_itemsize          # extra_token
              + 8 * Lp128 * 4)                # score_mask
    # in-kernel temporaries per batch element (broadcasts stay fused; ranking chunked)
    tmp = (4 * 4 * a_chunk * Lp128            # pairwise-comparison chunk tiles
           + 8 * 4 * Lp128                    # rank / keep / softmax row vectors
           + 8 * r_rows * Lp128               # Q (f32) + Q_hi/Q_lo (bf16)
           + 14 * Lp8 * Cp                    # token f32 copy + 3-way bf16 split
           + 16 * r_rows * Cp)                # fused matmul result + partial sums (f32)
    return io + tmp


def _choose_block_b(B, per_b, token_bytes_per_b, budget):
    divisors = [d for d in range(1, B + 1) if B % d == 0]
    fit = [d for d in divisors if d * per_b <= budget] or [1]
    # >= 2 steps per TensorCore on v7x, fill/drain amortization on v5e/v6e — but do
    # not shrink below ~1 MiB of token bytes per step.
    target_steps = min(4, B)
    min_step_token_bytes = 1 << 20
    block_b = fit[-1]
    for d in reversed(fit):
        if B // d >= target_steps or d * token_bytes_per_b <= min_step_token_bytes:
            block_b = d
            break
    return block_b


# --------------------------------------------------------------------------- #
# Public wrapper
# --------------------------------------------------------------------------- #
def token_sparse(tokens, attention_x, attention_y, sparse_ratio=0.6,
                 block_b=None, a_chunk=None):
    """Pallas TPU implementation of TokenSparse.forward.

    Returns (select_tokens (B,K,C), extra_token (B,1,C), score_mask (B,L))."""
    B, L, C = tokens.shape
    num_keep = math.ceil(L * sparse_ratio)
    k_pad = _round_up(num_keep, 8)        # sublane-dense select_tokens rows
    r_rows = k_pad + 8                    # weight row at sublane-aligned index k_pad

    score = attention_x + attention_y     # pre-added once in the wrapper
    s_row = score.reshape(B, 1, L)        # lane orientation
    s_col = score.reshape(B, L, 1)        # sublane orientation (no in-kernel transpose)

    if a_chunk is None:
        a_chunk = _pick_a_chunk(L)
    else:
        assert L % a_chunk == 0, "a_chunk must divide L"

    cap = _vmem_capacity_bytes()
    budget = (3 * cap) // 8               # ~24 MiB on v7x (64 MiB), ~48 MiB on 128 MiB parts
    per_b = _per_batch_vmem_bytes(L, C, k_pad, r_rows, a_chunk, tokens.dtype.itemsize)
    if block_b is None:
        block_b = _choose_block_b(B, per_b, L * C * tokens.dtype.itemsize, budget)
    else:
        assert B % block_b == 0, "block_b must divide B"

    est_bytes = block_b * per_b
    vmem_limit = None
    if est_bytes > 12 * 1024 * 1024:      # outgrew the smallest default scoped VMEM
        hi_cap = max(min(cap - (16 << 20), 100 << 20), 16 << 20)
        vmem_limit = min(_round_up(2 * est_bytes, 1 << 20), hi_cap)

    kernel = functools.partial(_token_sparse_kernel, num_keep=num_keep,
                               k_pad=k_pad, r_rows=r_rows, a_chunk=a_chunk)

    out_shape = (
        jax.ShapeDtypeStruct((B, k_pad, C), tokens.dtype),   # select_tokens (padded)
        jax.ShapeDtypeStruct((B, 1, C), tokens.dtype),       # extra_token
        jax.ShapeDtypeStruct((B, 1, L), score.dtype),        # score_mask
    )

    grid_spec = pltpu.PrefetchScalarGridSpec(
        num_scalar_prefetch=0,
        grid=(B // block_b,),
        in_specs=[
            pl.BlockSpec((block_b, L, C), lambda b: (b, 0, 0)),
            pl.BlockSpec((block_b, 1, L), lambda b: (b, 0, 0)),
            pl.BlockSpec((block_b, L, 1), lambda b: (b, 0, 0)),
        ],
        out_specs=[
            pl.BlockSpec((block_b, k_pad, C), lambda b: (b, 0, 0)),
            pl.BlockSpec((block_b, 1, C), lambda b: (b, 0, 0)),
            pl.BlockSpec((block_b, 1, L), lambda b: (b, 0, 0)),
        ],
    )

    sel_pad, extra, mask = pl.pallas_call(
        kernel,
        out_shape=out_shape,
        grid_spec=grid_spec,
        compiler_params=pltpu.CompilerParams(
            dimension_semantics=("parallel",),
            vmem_limit_bytes=vmem_limit),
    )(tokens, s_row, s_col)

    return sel_pad[:, :num_keep, :], extra, mask.reshape(B, L)


# --------------------------------------------------------------------------- #
# Pure-JAX reference matching the PyTorch forward
# --------------------------------------------------------------------------- #
def token_sparse_ref(tokens, attention_x, attention_y, sparse_ratio=0.6):
    B, L, C = tokens.shape
    K = math.ceil(L * sparse_ratio)
    score = attention_x + attention_y
    order = jnp.argsort(-score, axis=1)                    # descending, stable
    score_sort = jnp.take_along_axis(score, order, axis=1)
    keep_policy = order[:, :K]
    mask = jnp.zeros_like(score).at[jnp.arange(B)[:, None], keep_policy].set(1.0)
    sel = jnp.take_along_axis(tokens, keep_policy[:, :, None], axis=1)
    non_policy = order[:, K:]
    non_tokens = jnp.take_along_axis(tokens, non_policy[:, :, None], axis=1)
    nk_score = jax.nn.softmax(score_sort[:, K:], axis=1)[:, :, None]
    extra = jnp.sum(non_tokens * nk_score, axis=1, keepdims=True)
    return sel, extra, mask


if __name__ == "__main__":
    key = jax.random.PRNGKey(0)

    def run_case(B, L, C, ratio, block_b=None, a_chunk=None,
                 dtype=jnp.float32, rtol=1e-5, atol=1e-5):
        ks = jax.random.split(jax.random.fold_in(key, B * 100000 + L * 10 + C), 3)
        tokens = jax.random.normal(ks[0], (B, L, C), dtype=jnp.float32).astype(dtype)
        attention_x = jax.random.normal(ks[1], (B, L), dtype=jnp.float32)
        attention_y = jax.random.normal(ks[2], (B, L), dtype=jnp.float32)

        sel, extra, mask = token_sparse(tokens, attention_x, attention_y, ratio,
                                        block_b=block_b, a_chunk=a_chunk)
        jax.block_until_ready((sel, extra, mask))

        sel_r, extra_r, mask_r = token_sparse_ref(tokens, attention_x, attention_y, ratio)
        assert sel.shape == sel_r.shape and extra.shape == extra_r.shape
        assert mask.shape == mask_r.shape
        assert jnp.allclose(sel.astype(jnp.float32), sel_r.astype(jnp.float32),
                            rtol=rtol, atol=atol)
        assert jnp.allclose(extra.astype(jnp.float32), extra_r.astype(jnp.float32),
                            rtol=rtol, atol=atol)
        assert jnp.allclose(mask, mask_r)

    # K unaligned (10 -> pad 16), single ranking chunk, auto block_b
    run_case(B=2, L=16, C=32, ratio=0.6)
    # K aligned (8), explicit block_b=1 -> 4 pipelined grid steps
    run_case(B=4, L=16, C=32, ratio=0.5, block_b=1)
    # larger L with a_chunk=128 -> exercises the chunked (fori_loop) ranking path
    run_case(B=2, L=256, C=64, ratio=0.6, a_chunk=128)
    # bf16 tokens take the single-pass bf16 MXU path (compared at bf16 tolerance)
    run_case(B=2, L=16, C=32, ratio=0.6, dtype=jnp.bfloat16, rtol=2e-2, atol=2e-2)

    print("KERNEL_OK")
</pallas_src>

<mosaic_0001>
module attributes {stable_mosaic.version = 11 : i64} {
  func.func @_token_sparse_kernel(%arg0: i32, %arg1: memref<2x16x32xf32, #tpu.memory_space<vmem>>, %arg2: memref<2x1x16xf32, #tpu.memory_space<vmem>>, %arg3: memref<2x16x1xf32, #tpu.memory_space<vmem>>, %arg4: memref<2x16x32xf32, #tpu.memory_space<vmem>>, %arg5: memref<2x1x32xf32, #tpu.memory_space<vmem>>, %arg6: memref<2x1x16xf32, #tpu.memory_space<vmem>>) attributes {dimension_semantics = [#tpu.dimension_semantics<parallel>], iteration_bounds = array<i64: 1>, scalar_prefetch = 0 : i64, scratch_operands = 0 : i64, tpu.core_type = #tpu.core_type<tc>, window_params = [{transform_indices = @transform_0, window_bounds = array<i64: 2, 16, 32>}, {transform_indices = @transform_1, window_bounds = array<i64: 2, 1, 16>}, {transform_indices = @transform_2, window_bounds = array<i64: 2, 16, 1>}, {transform_indices = @transform_3, window_bounds = array<i64: 2, 16, 32>}, {transform_indices = @transform_4, window_bounds = array<i64: 2, 1, 32>}, {transform_indices = @transform_5, window_bounds = array<i64: 2, 1, 16>}]} {
    %c0 = arith.constant 0 : index
    %c0_0 = arith.constant 0 : index
    %c0_1 = arith.constant 0 : index
    %0 = vector.load %arg2[%c0, %c0_0, %c0_1] : memref<2x1x16xf32, #tpu.memory_space<vmem>>, vector<2x1x16xf32>
    %c0_2 = arith.constant 0 : index
    %c0_3 = arith.constant 0 : index
    %c0_4 = arith.constant 0 : index
    %1 = vector.load %arg3[%c0_2, %c0_3, %c0_4] : memref<2x16x1xf32, #tpu.memory_space<vmem>>, vector<2x16x1xf32>
    %2 = tpu.iota {dimensions = array<i32: 0>} : vector<16x16xi32>
    %c0_i32 = arith.constant 0 : i32
    %3 = vector.broadcast %c0_i32 : i32 to vector<16x16xi32>
    %4 = arith.addi %2, %3 : vector<16x16xi32>
    %5 = tpu.iota {dimensions = array<i32: 1>} : vector<16x16xi32>
    %6 = arith.cmpi slt, %4, %5 : vector<16x16xi32>
    %7 = vector.broadcast %1 : vector<2x16x1xf32> to vector<2x16x16xf32>
    %8 = vector.broadcast %0 : vector<2x1x16xf32> to vector<2x16x16xf32>
    %9 = arith.cmpf ogt, %7, %8 : vector<2x16x16xf32>
    %10 = vector.broadcast %1 : vector<2x16x1xf32> to vector<2x16x16xf32>
    %11 = vector.broadcast %0 : vector<2x1x16xf32> to vector<2x16x16xf32>
    %12 = arith.cmpf oeq, %10, %11 : vector<2x16x16xf32>
    %13 = vector.shape_cast %6 : vector<16x16xi1> to vector<1x16x16xi1>
    %14 = vector.broadcast %13 : vector<1x16x16xi1> to vector<2x16x16xi1>
    %15 = arith.andi %12, %14 : vector<2x16x16xi1>
    %16 = arith.ori %9, %15 : vector<2x16x16xi1>
    %17 = arith.extui %16 : vector<2x16x16xi1> to vector<2x16x16xi32>
    %cst = arith.constant dense<0> : vector<2x16xi32>
    %18 = vector.multi_reduction <add>, %17, %cst [1] : vector<2x16x16xi32> to vector<2x16xi32>
    %19 = vector.shape_cast %18 : vector<2x16xi32> to vector<2x1x16xi32>
    %c10_i32 = arith.constant 10 : i32
    %20 = vector.broadcast %c10_i32 : i32 to vector<2x1x16xi32>
    %21 = arith.cmpi slt, %19, %20 : vector<2x1x16xi32>
    %22 = arith.extui %21 : vector<2x1x16xi1> to vector<2x1x16xi32>
    %23 = arith.sitofp %22 : vector<2x1x16xi32> to vector<2x1x16xf32>
    %c0_5 = arith.constant 0 : index
    %c0_6 = arith.constant 0 : index
    %c0_7 = arith.constant 0 : index
    %24 = vector.load %arg6[%c0_5, %c0_6, %c0_7] : memref<2x1x16xf32, #tpu.memory_space<vmem>>, vector<2x1x16xf32>
    tpu.vector_store %arg6[%c0_5, %c0_6, %c0_7], %23 {strides = array<i32>} : memref<2x1x16xf32, #tpu.memory_space<vmem>>, vector<2x1x16xf32>,
    %cst_8 = arith.constant dense<true> : vector<2x1x16xi1>
    %25 = arith.xori %21, %cst_8 : vector<2x1x16xi1>
    %cst_9 = arith.constant -3.40282347E+38 : f32
    %26 = vector.broadcast %cst_9 : f32 to vector<2x1x16xf32>
    %27 = arith.select %25, %0, %26 : vector<2x1x16xi1>, vector<2x1x16xf32>
    %cst_10 = arith.constant dense<0xFF800000> : vector<2x1xf32>
    %28 = vector.multi_reduction <maximumf>, %27, %cst_10 [2] : vector<2x1x16xf32> to vector<2x1xf32>
    %29 = vector.shape_cast %28 : vector<2x1xf32> to vector<2x1x1xf32>
    %30 = vector.broadcast %29 : vector<2x1x1xf32> to vector<2x1x16xf32>
    %31 = arith.subf %0, %30 : vector<2x1x16xf32>
    %cst_11 = arith.constant 0.000000e+00 : f32
    %32 = vector.broadcast %cst_11 : f32 to vector<2x1x16xf32>
    %33 = arith.minimumf %31, %32 : vector<2x1x16xf32>
    %34 = math.exp %33 : vector<2x1x16xf32>
    %cst_12 = arith.constant 0.000000e+00 : f32
    %35 = vector.broadcast %cst_12 : f32 to vector<2x1x16xf32>
    %36 = arith.select %25, %34, %35 : vector<2x1x16xi1>, vector<2x1x16xf32>
    %cst_13 = arith.constant dense<0.000000e+00> : vector<2x1xf32>
    %37 = vector.multi_reduction <add>, %36, %cst_13 [2] : vector<2x1x16xf32> to vector<2x1xf32>
    %38 = vector.shape_cast %37 : vector<2x1xf32> to vector<2x1x1xf32>
    %cst_14 = arith.constant 1.000000e-30 : f32
    %39 = vector.broadcast %cst_14 : f32 to vector<2x1x1xf32>
    %40 = arith.maximumf %38, %39 : vector<2x1x1xf32>
    %41 = vector.broadcast %40 : vector<2x1x1xf32> to vector<2x1x16xf32>
    %42 = arith.divf %36, %41 : vector<2x1x16xf32>
    %43 = tpu.iota {dimensions = array<i32: 0>} : vector<24x16xi32>
    %44 = vector.shape_cast %43 : vector<24x16xi32> to vector<1x24x16xi32>
    %45 = vector.broadcast %19 : vector<2x1x16xi32> to vector<2x24x16xi32>
    %46 = vector.broadcast %44 : vector<1x24x16xi32> to vector<2x24x16xi32>
    %47 = arith.cmpi eq, %45, %46 : vector<2x24x16xi32>
    %c10_i32_15 = arith.constant 10 : i32
    %48 = vector.broadcast %c10_i32_15 : i32 to vector<24x16xi32>
    %49 = arith.cmpi slt, %43, %48 : vector<24x16xi32>
    %50 = vector.shape_cast %49 : vector<24x16xi1> to vector<1x24x16xi1>
    %51 = vector.broadcast %50 : vector<1x24x16xi1> to vector<2x24x16xi1>
    %52 = arith.andi %47, %51 : vector<2x24x16xi1>
    %c16_i32 = arith.constant 16 : i32
    %53 = vector.broadcast %c16_i32 : i32 to vector<24x16xi32>
    %54 = arith.cmpi eq, %43, %53 : vector<24x16xi32>
    %cst_16 = arith.constant 0.000000e+00 : f32
    %55 = vector.shape_cast %54 : vector<24x16xi1> to vector<1x24x16xi1>
    %56 = vector.broadcast %55 : vector<1x24x16xi1> to vector<2x24x16xi1>
    %57 = vector.shape_cast %42 : vector<2x1x16xf32> to vector<2x1x16xf32>
    %58 = vector.broadcast %57 : vector<2x1x16xf32> to vector<2x24x16xf32>
    %59 = vector.broadcast %cst_16 : f32 to vector<2x24x16xf32>
    %60 = arith.select %56, %58, %59 : vector<2x24x16xi1>, vector<2x24x16xf32>
    %cst_17 = arith.constant 1.000000e+00 : f32
    %61 = vector.broadcast %cst_17 : f32 to vector<2x24x16xf32>
    %62 = arith.select %52, %61, %60 : vector<2x24x16xi1>, vector<2x24x16xf32>
    %c0_18 = arith.constant 0 : index
    %c0_19 = arith.constant 0 : index
    %c0_20 = arith.constant 0 : index
    %63 = vector.load %arg1[%c0_18, %c0_19, %c0_20] : memref<2x16x32xf32, #tpu.memory_space<vmem>>, vector<2x16x32xf32>
    %64 = arith.truncf %63 : vector<2x16x32xf32> to vector<2x16x32xbf16>
    %65 = arith.extf %64 : vector<2x16x32xbf16> to vector<2x16x32xf32>
    %66 = arith.subf %63, %65 : vector<2x16x32xf32>
    %67 = arith.truncf %66 : vector<2x16x32xf32> to vector<2x16x32xbf16>
    %68 = arith.extf %67 : vector<2x16x32xbf16> to vector<2x16x32xf32>
    %69 = arith.subf %66, %68 : vector<2x16x32xf32>
    %70 = arith.truncf %69 : vector<2x16x32xf32> to vector<2x16x32xbf16>
    %71 = arith.truncf %62 : vector<2x24x16xf32> to vector<2x24x16xbf16>
    %72 = arith.extf %71 : vector<2x24x16xbf16> to vector<2x24x16xf32>
    %73 = arith.subf %62, %72 : vector<2x24x16xf32>
    %74 = arith.truncf %73 : vector<2x24x16xf32> to vector<2x24x16xbf16>
    "tpu.trace_start"() <{level = 10 : i32, message = "brl,blc->brc"}> : () -> ()
    %cst_21 = arith.constant dense<0.000000e+00> : vector<2x24x32xf32>
    %75 = tpu.matmul %71, %64, %cst_21 {dimension_numbers = #tpu.dot_dimension_numbers<[2], [1], [1], [2], [0, 0, 0, 1, 1, 2], [0], [0]>} : vector<2x24x16xbf16>, vector<2x16x32xbf16>, vector<2x24x32xf32> -> vector<2x24x32xf32>
    %cst_22 = arith.constant dense<0.000000e+00> : vector<2x24x32xf32>
    %76 = tpu.matmul %71, %67, %cst_22 {dimension_numbers = #tpu.dot_dimension_numbers<[2], [1], [1], [2], [0, 0, 0, 1, 1, 2], [0], [0]>} : vector<2x24x16xbf16>, vector<2x16x32xbf16>, vector<2x24x32xf32> -> vector<2x24x32xf32>
    "tpu.trace_stop"() : () -> ()
    %77 = arith.addf %75, %76 : vector<2x24x32xf32>
    "tpu.trace_start"() <{level = 10 : i32, message = "brl,blc->brc"}> : () -> ()
    %cst_23 = arith.constant dense<0.000000e+00> : vector<2x24x32xf32>
    %78 = tpu.matmul %71, %70, %cst_23 {dimension_numbers = #tpu.dot_dimension_numbers<[2], [1], [1], [2], [0, 0, 0, 1, 1, 2], [0], [0]>} : vector<2x24x16xbf16>, vector<2x16x32xbf16>, vector<2x24x32xf32> -> vector<2x24x32xf32>
    %cst_24 = arith.constant dense<0.000000e+00> : vector<2x24x32xf32>
    %79 = tpu.matmul %74, %64, %cst_24 {dimension_numbers = #tpu.dot_dimension_numbers<[2], [1], [1], [2], [0, 0, 0, 1, 1, 2], [0], [0]>} : vector<2x24x16xbf16>, vector<2x16x32xbf16>, vector<2x24x32xf32> -> vector<2x24x32xf32>
    "tpu.trace_stop"() : () -> ()
    %80 = arith.addf %78, %79 : vector<2x24x32xf32>
    %81 = arith.addf %77, %80 : vector<2x24x32xf32>
    %82 = vector.extract_strided_slice %81 {offsets = [0, 0, 0], sizes = [2, 16, 32], strides = [1, 1, 1]} : vector<2x24x32xf32> to vector<2x16x32xf32>
    %c0_25 = arith.constant 0 : index
    %c0_26 = arith.constant 0 : index
    %c0_27 = arith.constant 0 : index
    %83 = vector.load %arg4[%c0_25, %c0_26, %c0_27] : memref<2x16x32xf32, #tpu.memory_space<vmem>>, vector<2x16x32xf32>
    tpu.vector_store %arg4[%c0_25, %c0_26, %c0_27], %82 {strides = array<i32>} : memref<2x16x32xf32, #tpu.memory_space<vmem>>, vector<2x16x32xf32>,
    %84 = vector.extract_strided_slice %81 {offsets = [0, 16, 0], sizes = [2, 1, 32], strides = [1, 1, 1]} : vector<2x24x32xf32> to vector<2x1x32xf32>
    %c0_28 = arith.constant 0 : index
    %c0_29 = arith.constant 0 : index
    %c0_30 = arith.constant 0 : index
    %85 = vector.load %arg5[%c0_28, %c0_29, %c0_30] : memref<2x1x32xf32, #tpu.memory_space<vmem>>, vector<2x1x32xf32>
    tpu.vector_store %arg5[%c0_28, %c0_29, %c0_30], %84 {strides = array<i32>} : memref<2x1x32xf32, #tpu.memory_space<vmem>>, vector<2x1x32xf32>,
    return
  }
  func.func @transform_0(%arg0: i32) -> (i32, i32, i32) {
    %c0_i32 = arith.constant 0 : i32
    %c0_i32_0 = arith.constant 0 : i32
    %c0_i32_1 = arith.constant 0 : i32
    return %arg0, %c0_i32, %c0_i32_0 : i32, i32, i32
  }
  func.func @transform_1(%arg0: i32) -> (i32, i32, i32) {
    %c0_i32 = arith.constant 0 : i32
    %c0_i32_0 = arith.constant 0 : i32
    %c0_i32_1 = arith.constant 0 : i32
    return %arg0, %c0_i32, %c0_i32_0 : i32, i32, i32
  }
  func.func @transform_2(%arg0: i32) -> (i32, i32, i32) {
    %c0_i32 = arith.constant 0 : i32
    %c0_i32_0 = arith.constant 0 : i32
    %c0_i32_1 = arith.constant 0 : i32
    return %arg0, %c0_i32, %c0_i32_0 : i32, i32, i32
  }
  func.func @transform_3(%arg0: i32) -> (i32, i32, i32) {
    %c0_i32 = arith.constant 0 : i32
    %c0_i32_0 = arith.constant 0 : i32
    %c0_i32_1 = arith.constant 0 : i32
    return %arg0, %c0_i32, %c0_i32_0 : i32, i32, i32
  }
  func.func @transform_4(%arg0: i32) -> (i32, i32, i32) {
    %c0_i32 = arith.constant 0 : i32
    %c0_i32_0 = arith.constant 0 : i32
    %c0_i32_1 = arith.constant 0 : i32
    return %arg0, %c0_i32, %c0_i32_0 : i32, i32, i32
  }
  func.func @transform_5(%arg0: i32) -> (i32, i32, i32) {
    %c0_i32 = arith.constant 0 : i32
    %c0_i32_0 = arith.constant 0 : i32
    %c0_i32_1 = arith.constant 0 : i32
    return %arg0, %c0_i32, %c0_i32_0 : i32, i32, i32
  }
}

</mosaic_0001>

<llo_original>
// kernel: tpu_custom_call.1
$region0: #{tpu_custom_call.1}
  #allocation0 [shape = 'u32[]', space=smem, size = 0x4, offset = 0x4, fixed_abs, tag = 'smem constant byte address 0x4 - core index']
  #allocation1 [shape = 'u32[144,128]{1,0:T(1,128)}', space=vmem, size = 0x12000, scoped, tag = 'internal scratch']
  %s0 = inlined_call_operand.vmem [shape: f32[2,16,32], index: 0, kind: input, shape index: {}]
  %s1 = inlined_call_operand.vmem [shape: f32[2,1,16], index: 1, kind: input, shape index: {}]
  %s2 = inlined_call_operand.vmem [shape: f32[2,16,1], index: 2, kind: input, shape index: {}]
  %s3 = inlined_call_operand.hbm [shape: f32[2,16,32], index: 3, kind: output, shape index: {0}]
  %s4 = inlined_call_operand.hbm [shape: f32[2,1,32], index: 4, kind: output, shape index: {1}]
  %s5 = inlined_call_operand.hbm [shape: f32[2,1,16], index: 5, kind: output, shape index: {2}]
  %6 = xla_tuple %s3, %s4, %s5
  %s7 = sld [smem:[#allocation0]]
  $region38: #{tpu_custom_call.1} parent=0
    _
  %s9 = ssub.s32 1, %s7
  %s10 = scalar_select 0, %s9, %s7
  $region1: #{tpu_custom_call.1} parent=0
    #allocation2 [shape = 'u8[16384]{0}', space=vmem, size = 0x4000, scoped, tag = 'output window, operand 0, single buffered']
    #allocation3 [shape = 's32[1]{0}', space=sflag, size = 0x4, scoped, tag = 'scoped memory for tpu_custom_call.1']
    #allocation4 [shape = 'u8[1024]{0}', space=vmem, size = 0x400, scoped, tag = 'output window, operand 1, single buffered']
    #allocation5 [shape = 's32[1]{0}', space=sflag, size = 0x4, scoped, tag = 'scoped memory for tpu_custom_call.1']
    #allocation6 [shape = 'u8[1024]{0}', space=vmem, size = 0x400, scoped, tag = 'output window, operand 2, single buffered']
    %11 = vsyncpa [#allocation3], 0
    %12 = vsyncpa [#allocation5], 0
    // Predicated region
    $region2: #{tpu_custom_call.1} parent=1 // pred_check
      _
    $region3: #{tpu_custom_call.1} parent=1 // pred_check_branch
      %14 = sbr.rel (0) target = $region5
    $region4: #{tpu_custom_call.1} parent=1 // pred_region
      _
    $region5: #{tpu_custom_call.1} parent=1 // pred_fallthru
      _
    // Predicated region
    $region6: #{tpu_custom_call.1} parent=1 // pred_check
      _
    $region7: #{tpu_custom_call.1} parent=1 // pred_check_branch
      %16 = sbr.rel (0) target = $region9
    $region8: #{tpu_custom_call.1} parent=1 // pred_region
      _
    $region9: #{tpu_custom_call.1} parent=1 // pred_fallthru
      _
    // Predicated region
    $region10: #{tpu_custom_call.1} parent=1 // pred_check
      _
    $region11: #{tpu_custom_call.1} parent=1 // pred_check_branch
      %18 = sbr.rel (0) target = $region13
    $region12: #{tpu_custom_call.1} parent=1 // pred_region
      _
    $region13: #{tpu_custom_call.1} parent=1 // pred_fallthru
      _
    %v20 = vld [vmem:[%s1] sm:$0x1]
    %v21 = vld [vmem:[%s1 + $0x1] sm:$0x1]
    %v22 = vld [vmem:[%s2] sm:$0xff]
    %v23 = vld [vmem:[%s2 + $0x8] sm:$0xff]
    %v24 = vld [vmem:[%s2 + $0x10] sm:$0xff]
    %v25 = vld [vmem:[%s2 + $0x18] sm:$0xff]
    %v26 = vlaneseq
    %v27 = vshrl.u32 %v26, 7
    %v28 = vadd.s32 %v27, 8
    %v29 = vlaneseq
    %v30 = vand.u32 %v29, 127
    %vm31 = vcmp.lt.s32.totalorder %v27, %v30
    %vm32 = vcmp.lt.s32.totalorder %v28, %v30
    %34 = vset.pattern.permute.xlu0 0
    %35 = vperm.xlu0 %34, %v22
    %v36 = vpop.permute.xlu0 %35
    %39 = vset.pattern.permute.xlu0 0
    %40 = vperm.xlu0 %39, %v23
    %v41 = vpop.permute.xlu0 %40
    %44 = vset.pattern.permute.xlu0 0
    %45 = vperm.xlu0 %44, %v24
    %v46 = vpop.permute.xlu0 %45
    %49 = vset.pattern.permute.xlu0 0
    %50 = vperm.xlu0 %49, %v25
    %v51 = vpop.permute.xlu0 %50
    %v55 = vlaneseq
    %v56 = vshrl.u32 %v55, 7
    %v57 = vsub.s32 0, %v56
    %v58 = vrot.slane %v20, %v57
    %v59 = vlaneseq
    %v60 = vshrl.u32 %v59, 7
    %v61 = vsub.s32 0, %v60
    %v62 = vrot.slane %v21, %v61
    %vm65 = vcmp.gt.f32.partialorder %v36, %v58
    %vm66 = vcmp.gt.f32.partialorder %v41, %v58
    %vm67 = vcmp.gt.f32.partialorder %v46, %v62
    %vm68 = vcmp.gt.f32.partialorder %v51, %v62
    %vm69 = vcmp.eq.f32.partialorder %v36, %v58
    %vm70 = vcmp.eq.f32.partialorder %v41, %v58
    %vm71 = vcmp.eq.f32.partialorder %v46, %v62
    %vm72 = vcmp.eq.f32.partialorder %v51, %v62
    %v73 = vsel %vm31, 1, 0
    %v74 = vsel %vm32, 1, 0
    %vm75 = vcmp.eq.s32.totalorder %v73, 1
    %vm76 = vcmp.eq.s32.totalorder %v74, 1
    %vm77 = vmand %vm69, %vm75
    %vm78 = vmand %vm70, %vm76
    %vm79 = vmand %vm71, %vm75
    %vm80 = vmand %vm72, %vm76
    %vm81 = vmor %vm65, %vm77
    %vm82 = vmor %vm66, %vm78
    %vm83 = vmor %vm67, %vm79
    %vm84 = vmor %vm68, %vm80
    %v85 = vsel %vm81, 1, 0
    %v86 = vsel %vm82, 1, 0
    %v87 = vsel %vm83, 1, 0
    %v88 = vsel %vm84, 1, 0
    %vm89 = vcmask 130048
    %v90 = vsel %vm89, %v85, 0
    %v91 = vsel %vm89, %v86, 0
    %v92 = vadd.s32 %v90, %v91
    %v93 = vrot.slane %v92, 4
    %v94 = vadd.s32 %v92, %v93
    %v95 = vrot.slane %v94, 2
    %v96 = vadd.s32 %v94, %v95
    %v97 = vrot.slane %v96, 1
    %v98 = vadd.s32 %v96, %v97
    %v99 = vsel %vm89, %v87, 0
    %v100 = vsel %vm89, %v88, 0
    %v101 = vadd.s32 %v99, %v100
    %v102 = vrot.slane %v101, 4
    %v103 = vadd.s32 %v101, %v102
    %v104 = vrot.slane %v103, 2
    %v105 = vadd.s32 %v103, %v104
    %v106 = vrot.slane %v105, 1
    %v107 = vadd.s32 %v105, %v106
    %vm108 = vcmp.lt.s32.totalorder %v98, 10
    %vm109 = vcmp.lt.s32.totalorder %v107, 10
    %v110 = vsel %vm108, 1, 0
    %v111 = vsel %vm109, 1, 0
    %v112 = vcvt.s32.f32 %v110
    %v113 = vcvt.s32.f32 %v111
    %vm114 = vcmask 122880
    %115 = vst.msk [vmem:[#allocation6] sm:$0x1] %vm114, %v112
    %116 = vst.msk [vmem:[#allocation6 + $0x1] sm:$0x1] %vm114, %v113
    %vm117 = vmxor %vm108, 1
    %vm118 = vmxor %vm109, 1
    %v119 = vsel %vm117, %v20, -3.4028235e+38
    %v120 = vsel %vm118, %v21, -3.4028235e+38
    %v121 = vsel %vm114, %v119, -inf
    %122 = vmax.xlane.f32.xlu0 %v121
    %v123 = vpop.xlane.xlu0 %122
    %v124 = vsel %vm114, %v120, -inf
    %125 = vmax.xlane.f32.xlu0 %v124
    %v126 = vpop.xlane.xlu0 %125
    %v127 = vsub.f32 %v20, %v123
    %v128 = vsub.f32 %v21, %v126
    %v129 = vmin.f32 %v127, 0.0
    %v130 = vmin.f32 %v128, 0.0
    %v131 = vmul.f32 %v129, 1.442695
    %v132 = vpow.pop %v131
    %v133 = vmul.f32 %v130, 1.442695
    %v134 = vpow.pop %v133
    %v135 = vsel %vm117, %v132, 0.0
    %v136 = vsel %vm118, %v134, 0.0
    %v137 = vsel %vm114, %v135, 0.0
    %138 = vadd.xlane.f32.xlu0 %v137
    %v139 = vpop.xlane.xlu0 %138
    %v140 = vsel %vm114, %v136, 0.0
    %141 = vadd.xlane.f32.xlu0 %v140
    %v142 = vpop.xlane.xlu0 %141
    %v143 = vmax.f32 %v139, 1e-30
    %v144 = vmax.f32 %v142, 1e-30
    %v145 = vrcp.pop %v143
    %v146 = vmul.f32 %v135, %v145
    %v147 = vrcp.pop %v144
    %v148 = vmul.f32 %v136, %v147
    %v149 = vadd.s32 %v27, 16
    %vm150 = vcmp.eq.s32.totalorder %v98, %v27
    %vm151 = vcmp.eq.s32.totalorder %v98, %v28
    %vm152 = vcmp.eq.s32.totalorder %v98, %v149
    %vm153 = vcmp.eq.s32.totalorder %v107, %v27
    %vm154 = vcmp.eq.s32.totalorder %v107, %v28
    %vm155 = vcmp.eq.s32.totalorder %v107, %v149
    %vm156 = vcmp.lt.s32.totalorder %v27, 10
    %vm157 = vcmp.lt.s32.totalorder %v28, 10
    %vm158 = vcmp.lt.s32.totalorder %v149, 10
    %v159 = vsel %vm156, 1, 0
    %v160 = vsel %vm157, 1, 0
    %v161 = vsel %vm158, 1, 0
    %vm162 = vcmp.eq.s32.totalorder %v159, 1
    %vm163 = vcmp.eq.s32.totalorder %v160, 1
    %vm164 = vcmp.eq.s32.totalorder %v161, 1
    %vm165 = vmand %vm150, %vm162
    %vm166 = vmand %vm151, %vm163
    %vm167 = vmand %vm152, %vm164
    %vm168 = vmand %vm153, %vm162
    %vm169 = vmand %vm154, %vm163
    %vm170 = vmand %vm155, %vm164
    %vm171 = vcmp.eq.s32.totalorder %v27, 16
    %vm172 = vcmp.eq.s32.totalorder %v28, 16
    %vm173 = vcmp.eq.s32.totalorder %v149, 16
    %v174 = vsel %vm171, 1, 0
    %v175 = vsel %vm172, 1, 0
    %v176 = vsel %vm173, 1, 0
    %vm177 = vcmp.eq.s32.totalorder %v174, 1
    %vm178 = vcmp.eq.s32.totalorder %v175, 1
    %vm179 = vcmp.eq.s32.totalorder %v176, 1
    %v180 = vlaneseq
    %v181 = vshrl.u32 %v180, 7
    %v182 = vsub.s32 0, %v181
    %v183 = vrot.slane %v146, %v182
    %v184 = vlaneseq
    %v185 = vshrl.u32 %v184, 7
    %v186 = vsub.s32 0, %v185
    %v187 = vrot.slane %v148, %v186
    %v188 = vsel %vm177, %v183, 0.0
    %v189 = vsel %vm178, %v183, 0.0
    %v190 = vsel %vm179, %v183, 0.0
    %v191 = vsel %vm177, %v187, 0.0
    %v192 = vsel %vm178, %v187, 0.0
    %v193 = vsel %vm179, %v187, 0.0
    %v194 = vsel %vm165, 1.0, %v188
    %v195 = vsel %vm166, 1.0, %v189
    %v196 = vsel %vm167, 1.0, %v190
    %v197 = vsel %vm168, 1.0, %v191
    %v198 = vsel %vm169, 1.0, %v192
    %v199 = vsel %vm170, 1.0, %v193
    %v200 = vld [vmem:[%s0] sm:$0xff]
    %v201 = vld [vmem:[%s0 + $0x8] sm:$0xff]
    %v202 = vld [vmem:[%s0 + $0x10] sm:$0xff]
    %v203 = vld [vmem:[%s0 + $0x18] sm:$0xff]
    %v204 = vpack.c.bf16 %v201, %v200
    %v205 = vpack.c.bf16 %v203, %v202
    %v206 = vunpack.c.l.bf16 %v204
    %v207 = vunpack.c.h.bf16 %v204
    %v208 = vunpack.c.l.bf16 %v205
    %v209 = vunpack.c.h.bf16 %v205
    %v210 = vsub.f32 %v200, %v206
    %v211 = vsub.f32 %v201, %v207
    %v212 = vsub.f32 %v202, %v208
    %v213 = vsub.f32 %v203, %v209
    %v214 = vpack.c.bf16 %v211, %v210
    %v215 = vpack.c.bf16 %v213, %v212
    %v216 = vunpack.c.l.bf16 %v214
    %v217 = vunpack.c.h.bf16 %v214
    %v218 = vunpack.c.l.bf16 %v215
    %v219 = vunpack.c.h.bf16 %v215
    %v220 = vsub.f32 %v210, %v216
    %v221 = vsub.f32 %v211, %v217
    %v222 = vsub.f32 %v212, %v218
    %v223 = vsub.f32 %v213, %v219
    %v224 = vpack.c.bf16 %v221, %v220
    %v225 = vpack.c.bf16 %v223, %v222
    %v226 = vpack.c.bf16 %v195, %v194
    %v227 = vpack.c.bf16 %v196, %v196
    %v228 = vpack.c.bf16 %v198, %v197
    %v229 = vpack.c.bf16 %v199, %v199
    %v230 = vunpack.c.l.bf16 %v226
    %v231 = vunpack.c.h.bf16 %v226
    %v232 = vunpack.c.l.bf16 %v227
    %v233 = vunpack.c.l.bf16 %v228
    %v234 = vunpack.c.h.bf16 %v228
    %v235 = vunpack.c.l.bf16 %v229
    %v236 = vsub.f32 %v194, %v230
    %v237 = vsub.f32 %v195, %v231
    %v238 = vsub.f32 %v196, %v232
    %v239 = vsub.f32 %v197, %v233
    %v240 = vsub.f32 %v198, %v234
    %v241 = vsub.f32 %v199, %v235
    %v242 = vpack.c.bf16 %v237, %v236
    %v243 = vpack.c.bf16 %v238, %v238
    %v244 = vpack.c.bf16 %v240, %v239
    %v245 = vpack.c.bf16 %v241, %v241
    %v247 = vsel %vm89, %v226, 0
    %v250 = vsel %vm89, %v227, 0
    %252 = vmatprep.subr.bf16.mxu0 0
    %253 = vmatpush1.bf16.msra.mxu0 %v214
    %254 = vmatprep.subr.bf16.mxu0 0
    %255 = vmatpush1.bf16.msra.mxu0 0
    %256 = vmatprep.subr.bf16.mxu0 0
    %257 = vmatpush1.bf16.msra.mxu0 0
    %258 = vmatprep.subr.bf16.mxu0 0
    %259 = vmatpush1.bf16.msra.mxu0 0
    %260 = vmatprep.subr.bf16.mxu0 0
    %261 = vmatpush1.bf16.msra.mxu0 0
    %262 = vmatprep.subr.bf16.mxu0 0
    %263 = vmatpush1.bf16.msra.mxu0 0
    %264 = vmatprep.subr.bf16.mxu0 0
    %265 = vmatpush1.bf16.msra.mxu0 0
    %266 = vmatprep.subr.bf16.mxu0 0
    %267 = vmatpush1.bf16.msra.mxu0 0
    %268 = vmatprep.subr.bf16.mxu0 0
    %269 = vmatpush1.bf16.msra.mxu0 0
    %270 = vmatprep.subr.bf16.mxu0 0
    %271 = vmatpush1.bf16.msra.mxu0 0
    %272 = vmatprep.subr.bf16.mxu0 0
    %273 = vmatpush1.bf16.msra.mxu0 0
    %274 = vmatprep.subr.bf16.mxu0 0
    %275 = vmatpush1.bf16.msra.mxu0 0
    %276 = vmatprep.subr.bf16.mxu0 0
    %277 = vmatpush1.bf16.msra.mxu0 0
    %278 = vmatprep.subr.bf16.mxu0 0
    %279 = vmatpush1.bf16.msra.mxu0 0
    %280 = vmatprep.subr.bf16.mxu0 0
    %281 = vmatpush1.bf16.msra.mxu0 0
    %282 = vmatprep.subr.bf16.mxu0 0
    %283 = vmatpush1.bf16.msra.mxu0 0
    %284 = vmatprep.mubr.bf16.mxu0 0
    %285 = vmatmul.mubr.bf16.gmra.mrb[0].mxu0 %v247
    %v286 = vpop.f32.mrb[0].mxu0
    %v287 = vadd.f32 0.0, %v286
    %v288 = vpop.f32.mrb[0].mxu0
    %v289 = vpop.f32.mrb[0].mxu0
    %v290 = vadd.f32 0.0, %v289
    %v291 = vpop.f32.mrb[0].mxu0
    %292 = vmatprep.mubr.bf16.mxu0 0
    %293 = vmatmul.mubr.bf16.gmra.mrb[0].mxu0 %v250
    %v294 = vpop.f32.mrb[0].mxu0
    %v295 = vadd.f32 0.0, %v294
    %v296 = vpop.f32.mrb[0].mxu0
    %v297 = vpop.f32.mrb[0].mxu0
    %v298 = vpop.f32.mrb[0].mxu0
    %299 = vdwg.mxu0
    %v301 = vsel %vm89, %v228, 0
    %v304 = vsel %vm89, %v229, 0
    %306 = vmatprep.subr.bf16.mxu0 0
    %307 = vmatpush1.bf16.msra.mxu0 %v215
    %308 = vmatprep.subr.bf16.mxu0 0
    %309 = vmatpush1.bf16.msra.mxu0 0
    %310 = vmatprep.subr.bf16.mxu0 0
    %311 = vmatpush1.bf16.msra.mxu0 0
    %312 = vmatprep.subr.bf16.mxu0 0
    %313 = vmatpush1.bf16.msra.mxu0 0
    %314 = vmatprep.subr.bf16.mxu0 0
    %315 = vmatpush1.bf16.msra.mxu0 0
    %316 = vmatprep.subr.bf16.mxu0 0
    %317 = vmatpush1.bf16.msra.mxu0 0
    %318 = vmatprep.subr.bf16.mxu0 0
    %319 = vmatpush1.bf16.msra.mxu0 0
    %320 = vmatprep.subr.bf16.mxu0 0
    %321 = vmatpush1.bf16.msra.mxu0 0
    %322 = vmatprep.subr.bf16.mxu0 0
    %323 = vmatpush1.bf16.msra.mxu0 0
    %324 = vmatprep.subr.bf16.mxu0 0
    %325 = vmatpush1.bf16.msra.mxu0 0
    %326 = vmatprep.subr.bf16.mxu0 0
    %327 = vmatpush1.bf16.msra.mxu0 0
    %328 = vmatprep.subr.bf16.mxu0 0
    %329 = vmatpush1.bf16.msra.mxu0 0
    %330 = vmatprep.subr.bf16.mxu0 0
    %331 = vmatpush1.bf16.msra.mxu0 0
    %332 = vmatprep.subr.bf16.mxu0 0
    %333 = vmatpush1.bf16.msra.mxu0 0
    %334 = vmatprep.subr.bf16.mxu0 0
    %335 = vmatpush1.bf16.msra.mxu0 0
    %336 = vmatprep.subr.bf16.mxu0 0
    %337 = vmatpush1.bf16.msra.mxu0 0
    %338 = vmatprep.mubr.bf16.mxu0 0
    %339 = vmatmul.mubr.bf16.gmra.mrb[0].mxu0 %v301
    %v340 = vpop.f32.mrb[0].mxu0
    %v341 = vadd.f32 0.0, %v340
    %v342 = vpop.f32.mrb[0].mxu0
    %v343 = vpop.f32.mrb[0].mxu0
    %v344 = vadd.f32 0.0, %v343
    %v345 = vpop.f32.mrb[0].mxu0
    %346 = vmatprep.mubr.bf16.mxu0 0
    %347 = vmatmul.mubr.bf16.gmra.mrb[0].mxu0 %v304
    %v348 = vpop.f32.mrb[0].mxu0
    %v349 = vadd.f32 0.0, %v348
    %v350 = vpop.f32.mrb[0].mxu0
    %v351 = vpop.f32.mrb[0].mxu0
    %v352 = vpop.f32.mrb[0].mxu0
    %353 = vdwg.mxu0
    %354 = vmatprep.subr.bf16.mxu0 0
    %355 = vmatpush1.bf16.msra.mxu0 %v204
    %356 = vmatprep.subr.bf16.mxu0 0
    %357 = vmatpush1.bf16.msra.mxu0 0
    %358 = vmatprep.subr.bf16.mxu0 0
    %359 = vmatpush1.bf16.msra.mxu0 0
    %360 = vmatprep.subr.bf16.mxu0 0
    %361 = vmatpush1.bf16.msra.mxu0 0
    %362 = vmatprep.subr.bf16.mxu0 0
    %363 = vmatpush1.bf16.msra.mxu0 0
    %364 = vmatprep.subr.bf16.mxu0 0
    %365 = vmatpush1.bf16.msra.mxu0 0
    %366 = vmatprep.subr.bf16.mxu0 0
    %367 = vmatpush1.bf16.msra.mxu0 0
    %368 = vmatprep.subr.bf16.mxu0 0
    %369 = vmatpush1.bf16.msra.mxu0 0
    %370 = vmatprep.subr.bf16.mxu0 0
    %371 = vmatpush1.bf16.msra.mxu0 0
    %372 = vmatprep.subr.bf16.mxu0 0
    %373 = vmatpush1.bf16.msra.mxu0 0
    %374 = vmatprep.subr.bf16.mxu0 0
    %375 = vmatpush1.bf16.msra.mxu0 0
    %376 = vmatprep.subr.bf16.mxu0 0
    %377 = vmatpush1.bf16.msra.mxu0 0
    %378 = vmatprep.subr.bf16.mxu0 0
    %379 = vmatpush1.bf16.msra.mxu0 0
    %380 = vmatprep.subr.bf16.mxu0 0
    %381 = vmatpush1.bf16.msra.mxu0 0
    %382 = vmatprep.subr.bf16.mxu0 0
    %383 = vmatpush1.bf16.msra.mxu0 0
    %384 = vmatprep.subr.bf16.mxu0 0
    %385 = vmatpush1.bf16.msra.mxu0 0
    %386 = vmatprep.mubr.bf16.mxu0 0
    %387 = vmatmul.mubr.bf16.gmra.mrb[0].mxu0 %v247
    %v388 = vpop.f32.mrb[0].mxu0
    %v389 = vadd.f32 %v287, %v388
    %v390 = vpop.f32.mrb[0].mxu0
    %v391 = vpop.f32.mrb[0].mxu0
    %v392 = vadd.f32 %v290, %v391
    %v393 = vpop.f32.mrb[0].mxu0
    %394 = vmatprep.mubr.bf16.mxu0 0
    %395 = vmatmul.mubr.bf16.gmra.mrb[0].mxu0 %v250
    %v396 = vpop.f32.mrb[0].mxu0
    %v397 = vadd.f32 %v295, %v396
    %v398 = vpop.f32.mrb[0].mxu0
    %v399 = vpop.f32.mrb[0].mxu0
    %v400 = vpop.f32.mrb[0].mxu0
    %401 = vdwg.mxu0
    %402 = vmatprep.subr.bf16.mxu0 0
    %403 = vmatpush1.bf16.msra.mxu0 %v205
    %404 = vmatprep.subr.bf16.mxu0 0
    %405 = vmatpush1.bf16.msra.mxu0 0
    %406 = vmatprep.subr.bf16.mxu0 0
    %407 = vmatpush1.bf16.msra.mxu0 0
    %408 = vmatprep.subr.bf16.mxu0 0
    %409 = vmatpush1.bf16.msra.mxu0 0
    %410 = vmatprep.subr.bf16.mxu0 0
    %411 = vmatpush1.bf16.msra.mxu0 0
    %412 = vmatprep.subr.bf16.mxu0 0
    %413 = vmatpush1.bf16.msra.mxu0 0
    %414 = vmatprep.subr.bf16.mxu0 0
    %415 = vmatpush1.bf16.msra.mxu0 0
    %416 = vmatprep.subr.bf16.mxu0 0
    %417 = vmatpush1.bf16.msra.mxu0 0
    %418 = vmatprep.subr.bf16.mxu0 0
    %419 = vmatpush1.bf16.msra.mxu0 0
    %420 = vmatprep.subr.bf16.mxu0 0
    %421 = vmatpush1.bf16.msra.mxu0 0
    %422 = vmatprep.subr.bf16.mxu0 0
    %423 = vmatpush1.bf16.msra.mxu0 0
    %424 = vmatprep.subr.bf16.mxu0 0
    %425 = vmatpush1.bf16.msra.mxu0 0
    %426 = vmatprep.subr.bf16.mxu0 0
    %427 = vmatpush1.bf16.msra.mxu0 0
    %428 = vmatprep.subr.bf16.mxu0 0
    %429 = vmatpush1.bf16.msra.mxu0 0
    %430 = vmatprep.subr.bf16.mxu0 0
    %431 = vmatpush1.bf16.msra.mxu0 0
    %432 = vmatprep.subr.bf16.mxu0 0
    %433 = vmatpush1.bf16.msra.mxu0 0
    %434 = vmatprep.mubr.bf16.mxu0 0
    %435 = vmatmul.mubr.bf16.gmra.mrb[0].mxu0 %v301
    %v436 = vpop.f32.mrb[0].mxu0
    %v437 = vadd.f32 %v341, %v436
    %v438 = vpop.f32.mrb[0].mxu0
    %v439 = vpop.f32.mrb[0].mxu0
    %v440 = vadd.f32 %v344, %v439
    %v441 = vpop.f32.mrb[0].mxu0
    %442 = vmatprep.mubr.bf16.mxu0 0
    %443 = vmatmul.mubr.bf16.gmra.mrb[0].mxu0 %v304
    %v444 = vpop.f32.mrb[0].mxu0
    %v445 = vadd.f32 %v349, %v444
    %v446 = vpop.f32.mrb[0].mxu0
    %v447 = vpop.f32.mrb[0].mxu0
    %v448 = vpop.f32.mrb[0].mxu0
    %449 = vdwg.mxu0
    %v451 = vsel %vm89, %v242, 0
    %v454 = vsel %vm89, %v243, 0
    %456 = vmatprep.subr.bf16.mxu0 0
    %457 = vmatpush1.bf16.msra.mxu0 %v204
    %458 = vmatprep.subr.bf16.mxu0 0
    %459 = vmatpush1.bf16.msra.mxu0 0
    %460 = vmatprep.subr.bf16.mxu0 0
    %461 = vmatpush1.bf16.msra.mxu0 0
    %462 = vmatprep.subr.bf16.mxu0 0
    %463 = vmatpush1.bf16.msra.mxu0 0
    %464 = vmatprep.subr.bf16.mxu0 0
    %465 = vmatpush1.bf16.msra.mxu0 0
    %466 = vmatprep.subr.bf16.mxu0 0
    %467 = vmatpush1.bf16.msra.mxu0 0
    %468 = vmatprep.subr.bf16.mxu0 0
    %469 = vmatpush1.bf16.msra.mxu0 0
    %470 = vmatprep.subr.bf16.mxu0 0
    %471 = vmatpush1.bf16.msra.mxu0 0
    %472 = vmatprep.subr.bf16.mxu0 0
    %473 = vmatpush1.bf16.msra.mxu0 0
    %474 = vmatprep.subr.bf16.mxu0 0
    %475 = vmatpush1.bf16.msra.mxu0 0
    %476 = vmatprep.subr.bf16.mxu0 0
    %477 = vmatpush1.bf16.msra.mxu0 0
    %478 = vmatprep.subr.bf16.mxu0 0
    %479 = vmatpush1.bf16.msra.mxu0 0
    %480 = vmatprep.subr.bf16.mxu0 0
    %481 = vmatpush1.bf16.msra.mxu0 0
    %482 = vmatprep.subr.bf16.mxu0 0
    %483 = vmatpush1.bf16.msra.mxu0 0
    %484 = vmatprep.subr.bf16.mxu0 0
    %485 = vmatpush1.bf16.msra.mxu0 0
    %486 = vmatprep.subr.bf16.mxu0 0
    %487 = vmatpush1.bf16.msra.mxu0 0
    %488 = vmatprep.mubr.bf16.mxu0 0
    %489 = vmatmul.mubr.bf16.gmra.mrb[0].mxu0 %v451
    %v490 = vpop.f32.mrb[0].mxu0
    %v491 = vadd.f32 0.0, %v490
    %v492 = vpop.f32.mrb[0].mxu0
    %v493 = vpop.f32.mrb[0].mxu0
    %v494 = vadd.f32 0.0, %v493
    %v495 = vpop.f32.mrb[0].mxu0
    %496 = vmatprep.mubr.bf16.mxu0 0
    %497 = vmatmul.mubr.bf16.gmra.mrb[0].mxu0 %v454
    %v498 = vpop.f32.mrb[0].mxu0
    %v499 = vadd.f32 0.0, %v498
    %v500 = vpop.f32.mrb[0].mxu0
    %v501 = vpop.f32.mrb[0].mxu0
    %v502 = vpop.f32.mrb[0].mxu0
    %503 = vdwg.mxu0
    %v505 = vsel %vm89, %v244, 0
    %v508 = vsel %vm89, %v245, 0
    %510 = vmatprep.subr.bf16.mxu0 0
    %511 = vmatpush1.bf16.msra.mxu0 %v205
    %512 = vmatprep.subr.bf16.mxu0 0
    %513 = vmatpush1.bf16.msra.mxu0 0
    %514 = vmatprep.subr.bf16.mxu0 0
    %515 = vmatpush1.bf16.msra.mxu0 0
    %516 = vmatprep.subr.bf16.mxu0 0
    %517 = vmatpush1.bf16.msra.mxu0 0
    %518 = vmatprep.subr.bf16.mxu0 0
    %519 = vmatpush1.bf16.msra.mxu0 0
    %520 = vmatprep.subr.bf16.mxu0 0
    %521 = vmatpush1.bf16.msra.mxu0 0
    %522 = vmatprep.subr.bf16.mxu0 0
    %523 = vmatpush1.bf16.msra.mxu0 0
    %524 = vmatprep.subr.bf16.mxu0 0
    %525 = vmatpush1.bf16.msra.mxu0 0
    %526 = vmatprep.subr.bf16.mxu0 0
    %527 = vmatpush1.bf16.msra.mxu0 0
    %528 = vmatprep.subr.bf16.mxu0 0
    %529 = vmatpush1.bf16.msra.mxu0 0
    %530 = vmatprep.subr.bf16.mxu0 0
    %531 = vmatpush1.bf16.msra.mxu0 0
    %532 = vmatprep.subr.bf16.mxu0 0
    %533 = vmatpush1.bf16.msra.mxu0 0
    %534 = vmatprep.subr.bf16.mxu0 0
    %535 = vmatpush1.bf16.msra.mxu0 0
    %536 = vmatprep.subr.bf16.mxu0 0
    %537 = vmatpush1.bf16.msra.mxu0 0
    %538 = vmatprep.subr.bf16.mxu0 0
    %539 = vmatpush1.bf16.msra.mxu0 0
    %540 = vmatprep.subr.bf16.mxu0 0
    %541 = vmatpush1.bf16.msra.mxu0 0
    %542 = vmatprep.mubr.bf16.mxu0 0
    %543 = vmatmul.mubr.bf16.gmra.mrb[0].mxu0 %v505
    %v544 = vpop.f32.mrb[0].mxu0
    %v545 = vadd.f32 0.0, %v544
    %v546 = vpop.f32.mrb[0].mxu0
    %v547 = vpop.f32.mrb[0].mxu0
    %v548 = vadd.f32 0.0, %v547
    %v549 = vpop.f32.mrb[0].mxu0
    %550 = vmatprep.mubr.bf16.mxu0 0
    %551 = vmatmul.mubr.bf16.gmra.mrb[0].mxu0 %v508
    %v552 = vpop.f32.mrb[0].mxu0
    %v553 = vadd.f32 0.0, %v552
    %v554 = vpop.f32.mrb[0].mxu0
    %v555 = vpop.f32.mrb[0].mxu0
    %v556 = vpop.f32.mrb[0].mxu0
    %557 = vdwg.mxu0
    %558 = vmatprep.subr.bf16.mxu0 0
    %559 = vmatpush1.bf16.msra.mxu0 %v224
    %560 = vmatprep.subr.bf16.mxu0 0
    %561 = vmatpush1.bf16.msra.mxu0 0
    %562 = vmatprep.subr.bf16.mxu0 0
    %563 = vmatpush1.bf16.msra.mxu0 0
    %564 = vmatprep.subr.bf16.mxu0 0
    %565 = vmatpush1.bf16.msra.mxu0 0
    %566 = vmatprep.subr.bf16.mxu0 0
    %567 = vmatpush1.bf16.msra.mxu0 0
    %568 = vmatprep.subr.bf16.mxu0 0
    %569 = vmatpush1.bf16.msra.mxu0 0
    %570 = vmatprep.subr.bf16.mxu0 0
    %571 = vmatpush1.bf16.msra.mxu0 0
    %572 = vmatprep.subr.bf16.mxu0 0
    %573 = vmatpush1.bf16.msra.mxu0 0
    %574 = vmatprep.subr.bf16.mxu0 0
    %575 = vmatpush1.bf16.msra.mxu0 0
    %576 = vmatprep.subr.bf16.mxu0 0
    %577 = vmatpush1.bf16.msra.mxu0 0
    %578 = vmatprep.subr.bf16.mxu0 0
    %579 = vmatpush1.bf16.msra.mxu0 0
    %580 = vmatprep.subr.bf16.mxu0 0
    %581 = vmatpush1.bf16.msra.mxu0 0
    %582 = vmatprep.subr.bf16.mxu0 0
    %583 = vmatpush1.bf16.msra.mxu0 0
    %584 = vmatprep.subr.bf16.mxu0 0
    %585 = vmatpush1.bf16.msra.mxu0 0
    %586 = vmatprep.subr.bf16.mxu0 0
    %587 = vmatpush1.bf16.msra.mxu0 0
    %588 = vmatprep.subr.bf16.mxu0 0
    %589 = vmatpush1.bf16.msra.mxu0 0
    %590 = vmatprep.mubr.bf16.mxu0 0
    %591 = vmatmul.mubr.bf16.gmra.mrb[0].mxu0 %v247
    %v592 = vpop.f32.mrb[0].mxu0
    %v593 = vadd.f32 %v491, %v592
    %v594 = vpop.f32.mrb[0].mxu0
    %v595 = vpop.f32.mrb[0].mxu0
    %v596 = vadd.f32 %v494, %v595
    %v597 = vpop.f32.mrb[0].mxu0
    %598 = vmatprep.mubr.bf16.mxu0 0
    %599 = vmatmul.mubr.bf16.gmra.mrb[0].mxu0 %v250
    %v600 = vpop.f32.mrb[0].mxu0
    %v601 = vadd.f32 %v499, %v600
    %v602 = vpop.f32.mrb[0].mxu0
    %v603 = vpop.f32.mrb[0].mxu0
    %v604 = vpop.f32.mrb[0].mxu0
    %605 = vdwg.mxu0
    %606 = vmatprep.subr.bf16.mxu0 0
    %607 = vmatpush1.bf16.msra.mxu0 %v225
    %608 = vmatprep.subr.bf16.mxu0 0
    %609 = vmatpush1.bf16.msra.mxu0 0
    %610 = vmatprep.subr.bf16.mxu0 0
    %611 = vmatpush1.bf16.msra.mxu0 0
    %612 = vmatprep.subr.bf16.mxu0 0
    %613 = vmatpush1.bf16.msra.mxu0 0
    %614 = vmatprep.subr.bf16.mxu0 0
    %615 = vmatpush1.bf16.msra.mxu0 0
    %616 = vmatprep.subr.bf16.mxu0 0
    %617 = vmatpush1.bf16.msra.mxu0 0
    %618 = vmatprep.subr.bf16.mxu0 0
    %619 = vmatpush1.bf16.msra.mxu0 0
    %620 = vmatprep.subr.bf16.mxu0 0
    %621 = vmatpush1.bf16.msra.mxu0 0
    %622 = vmatprep.subr.bf16.mxu0 0
    %623 = vmatpush1.bf16.msra.mxu0 0
    %624 = vmatprep.subr.bf16.mxu0 0
    %625 = vmatpush1.bf16.msra.mxu0 0
    %626 = vmatprep.subr.bf16.mxu0 0
    %627 = vmatpush1.bf16.msra.mxu0 0
    %628 = vmatprep.subr.bf16.mxu0 0
    %629 = vmatpush1.bf16.msra.mxu0 0
    %630 = vmatprep.subr.bf16.mxu0 0
    %631 = vmatpush1.bf16.msra.mxu0 0
    %632 = vmatprep.subr.bf16.mxu0 0
    %633 = vmatpush1.bf16.msra.mxu0 0
    %634 = vmatprep.subr.bf16.mxu0 0
    %635 = vmatpush1.bf16.msra.mxu0 0
    %636 = vmatprep.subr.bf16.mxu0 0
    %637 = vmatpush1.bf16.msra.mxu0 0
    %638 = vmatprep.mubr.bf16.mxu0 0
    %639 = vmatmul.mubr.bf16.gmra.mrb[0].mxu0 %v301
    %v640 = vpop.f32.mrb[0].mxu0
    %v641 = vadd.f32 %v545, %v640
    %v642 = vpop.f32.mrb[0].mxu0
    %v643 = vpop.f32.mrb[0].mxu0
    %v644 = vadd.f32 %v548, %v643
    %v645 = vpop.f32.mrb[0].mxu0
    %646 = vmatprep.mubr.bf16.mxu0 0
    %647 = vmatmul.mubr.bf16.gmra.mrb[0].mxu0 %v304
    %v648 = vpop.f32.mrb[0].mxu0
    %v649 = vadd.f32 %v553, %v648
    %v650 = vpop.f32.mrb[0].mxu0
    %v651 = vpop.f32.mrb[0].mxu0
    %v652 = vpop.f32.mrb[0].mxu0
    %653 = vdwg.mxu0
    %v654 = vadd.f32 %v389, %v593
    %v655 = vadd.f32 %v392, %v596
    %v656 = vadd.f32 %v397, %v601
    %v657 = vadd.f32 %v437, %v641
    %v658 = vadd.f32 %v440, %v644
    %v659 = vadd.f32 %v445, %v649
    %vm660 = vcmask 261120
    %661 = vst.msk [vmem:[#allocation2] sm:$0xff] %vm660, %v654
    %662 = vst.msk [vmem:[#allocation2 + $0x8] sm:$0xff] %vm660, %v655
    %663 = vst.msk [vmem:[#allocation2 + $0x10] sm:$0xff] %vm660, %v657
    %664 = vst.msk [vmem:[#allocation2 + $0x18] sm:$0xff] %vm660, %v658
    %vm665 = vcmask 253952
    %666 = vst.msk [vmem:[#allocation4] sm:$0x1] %vm665, %v656
    %667 = vst.msk [vmem:[#allocation4 + $0x1] sm:$0x1] %vm665, %v659
    // Predicated region
    $region14: #{tpu_custom_call.1} parent=1 // pred_check
      _
    $region15: #{tpu_custom_call.1} parent=1 // pred_check_branch
      %669 = sbr.rel (0) target = $region17
    $region16: #{tpu_custom_call.1} parent=1 // pred_region
      %s671 = ssub.s32 512, 512
      %672 = vsyncadd [#allocation3], %s671
      %s673 = sshll.u32 [#allocation2], 4
      %s674 = int_to_ptr.vmem [resolvable:$true] %s673
      %679 = dma.vmem_to_hbm [thread:$0]  %s674, 512, %s3, [#allocation3], 128, 128, 8
    $region17: #{tpu_custom_call.1} parent=1 // pred_fallthru
      _
    // Predicated region
    $region18: #{tpu_custom_call.1} parent=1 // pred_check
      _
    $region19: #{tpu_custom_call.1} parent=1 // pred_check_branch
      %681 = sbr.rel (0) target = $region21
    $region20: #{tpu_custom_call.1} parent=1 // pred_region
      %s683 = ssub.s32 32, 32
      %684 = vsyncadd [#allocation5], %s683
      %s685 = sshll.u32 [#allocation4], 4
      %s686 = int_to_ptr.vmem [resolvable:$true] %s685
      %691 = dma.vmem_to_hbm [thread:$0]  %s686, 32, %s4, [#allocation5], 16, 16, 1
    $region21: #{tpu_custom_call.1} parent=1 // pred_fallthru
      _
    // Predicated region
    $region22: #{tpu_custom_call.1} parent=1 // pred_check
      _
    $region23: #{tpu_custom_call.1} parent=1 // pred_check_branch
      %693 = sbr.rel (0) target = $region25
    $region24: #{tpu_custom_call.1} parent=1 // pred_region
      %s695 = ssub.s32 32, 32
      %696 = vsyncadd [#allocation5], %s695
      %s697 = sshll.u32 [#allocation6], 4
      %s698 = int_to_ptr.vmem [resolvable:$true] %s697
      %703 = dma.vmem_to_hbm [thread:$0]  %s698, 32, %s5, [#allocation5], 16, 16, 1
    $region25: #{tpu_custom_call.1} parent=1 // pred_fallthru
      _
    // Predicated region
    $region26: #{tpu_custom_call.1} parent=1 // pred_check
      _
    $region27: #{tpu_custom_call.1} parent=1 // pred_check_branch
      %705 = sbr.rel (0) target = $region29
    $region28: #{tpu_custom_call.1} parent=1 // pred_region
      %706 = dma.done [#allocation3], 512
    $region29: #{tpu_custom_call.1} parent=1 // pred_fallthru
      _
    // Predicated region
    $region30: #{tpu_custom_call.1} parent=1 // pred_check
      _
    $region31: #{tpu_custom_call.1} parent=1 // pred_check_branch
      %708 = sbr.rel (0) target = $region33
    $region32: #{tpu_custom_call.1} parent=1 // pred_region
      %709 = dma.done [#allocation5], 32
    $region33: #{tpu_custom_call.1} parent=1 // pred_fallthru
      _
    // Predicated region
    $region34: #{tpu_custom_call.1} parent=1 // pred_check
      _
    $region35: #{tpu_custom_call.1} parent=1 // pred_check_branch
      %711 = sbr.rel (0) target = $region37
    $region36: #{tpu_custom_call.1} parent=1 // pred_region
      %712 = dma.done [#allocation5], 32
    $region37: #{tpu_custom_call.1} parent=1 // pred_fallthru
      _
    %713 = vsyncpa [#allocation3], 1
    %714 = vsyncpa [#allocation5], 1

</llo_original>
